<compile_context>
chip_gen: v7x
topology: tpu7x:2x2x1
jax: 0.10.0
libtpu: 0.0.40
codegen_flags: <defaults>
</compile_context>

<pallas_src>
import functools

import numpy as np

import jax
import jax.numpy as jnp
from jax.experimental import pallas as pl
from jax.experimental.pallas import tpu as pltpu


def _round_up(x, m):
    return (x + m - 1) // m * m


# ----------------------------------------------------------------------------
# Fused kernel: im2col conv (all branches) + bias + ReLU + masked max-pool
#               + FC + log_softmax, for one batch tile.
# ----------------------------------------------------------------------------
def cnn_text_fused_kernel(emb_ref, wc_ref, bc_ref, mask_ref, wf_ref, bf_ref,
                          out_ref, *, Kmax, T_u):
    # emb_ref : (TN, L_pad, D)   bf16   zero-padded along time to L + Kmax-Kmin
    # wc_ref  : (Kmax*D, F_pad)  bf16   packed conv weights (zero rows/cols pad)
    # bc_ref  : (1, F_pad)       f32    packed conv bias
    # mask_ref: (T_u, F_pad)     f32    1.0 where time step t is valid for the
    #                                    branch owning column f, else 0.0
    # wf_ref  : (F_pad, C_pad)   f32    packed FC weight
    # bf_ref  : (1, C_pad)       f32    FC bias, -1e30 on padded classes
    # out_ref : (TN, C_pad)      f32    log-probs (padded classes are garbage)
    TN, L_pad, D = emb_ref.shape
    F_pad = wc_ref.shape[1]

    emb = emb_ref[...]                                              # bf16
    # im2col: one lane-concat patch covering all branches, then a single
    # K*D-deep MXU matmul (instead of K shallow D-deep matmuls per branch).
    patch = jnp.concatenate(
        [emb[:, k:k + T_u, :] for k in range(Kmax)], axis=-1)       # (TN,T_u,Kmax*D)
    patch = patch.reshape(TN * T_u, Kmax * D)

    conv = jnp.dot(patch, wc_ref[...],
                   preferred_element_type=jnp.float32)              # (TN*T_u,F_pad) f32
    conv = jnp.maximum(conv + bc_ref[...], 0.0)                     # bias + ReLU (f32)
    conv = conv.reshape(TN, T_u, F_pad) * mask_ref[...]             # zero invalid steps
    pooled = jnp.max(conv, axis=1)                                  # (TN, F_pad) max-pool

    # Dropout(0.5) is identity at inference.
    logits = jnp.dot(pooled, wf_ref[...],
                     preferred_element_type=jnp.float32) + bf_ref[...]  # (TN, C_pad)
    m = jnp.max(logits, axis=-1, keepdims=True)
    z = logits - m
    lse = jnp.log(jnp.sum(jnp.exp(z), axis=-1, keepdims=True))
    out_ref[...] = (z - lse).astype(out_ref.dtype)


# ----------------------------------------------------------------------------
# Parameter packing (lane-dense, branch-fused layouts)
# ----------------------------------------------------------------------------
def _pack_params(params, Ks, D, Co, C):
    Kmax = max(Ks)
    F = len(Ks) * Co
    F_pad = _round_up(F, 128)
    C_pad = _round_up(C, 128)

    wc = jnp.zeros((Kmax * D, F_pad), jnp.float32)
    bc = jnp.zeros((F_pad,), jnp.float32)
    for b, K in enumerate(Ks):
        wc = wc.at[:K * D, b * Co:(b + 1) * Co].set(
            params["conv_w"][b].reshape(K * D, Co))
        bc = bc.at[b * Co:(b + 1) * Co].set(params["conv_b"][b])

    wf = jnp.zeros((F_pad, C_pad), jnp.float32).at[:F, :C].set(params["fc_w"])
    # Padded classes get a huge negative bias so log_softmax ignores them.
    bf = jnp.full((C_pad,), -1e30, jnp.float32).at[:C].set(params["fc_b"])

    return (wc.astype(jnp.bfloat16), bc.reshape(1, F_pad),
            wf, bf.reshape(1, C_pad), F_pad, C_pad)


def _build_time_mask(L, Ks, Co, T_u, F_pad):
    mask = np.zeros((T_u, F_pad), np.float32)
    for b, K in enumerate(Ks):
        mask[:L - K + 1, b * Co:(b + 1) * Co] = 1.0
    return jnp.asarray(mask)


# ----------------------------------------------------------------------------
# Full forward pass
# ----------------------------------------------------------------------------
def cnn_text_forward(tokens, params, kernel_sizes, *, batch_tile=128):
    # NOTE: batch_tile=128 keeps the double-buffered tile comfortably inside
    # v7x's 64 MiB VMEM as well; raise it on v5e/v6e if the batch is large.
    Ks = tuple(kernel_sizes)
    Kmax, Kmin = max(Ks), min(Ks)
    V, D = params["embed"].shape
    Co = params["conv_w"][0].shape[-1]
    C = params["fc_w"].shape[1]
    N, L = tokens.shape
    assert L >= Kmax, "sequence length must be >= max kernel size"
    T_u = L - Kmin + 1
    L_pad = L + (Kmax - Kmin)

    # Embedding gather + time zero-pad (plain-JAX glue).
    # TODO(synk): fuse the gather via PrefetchScalarGridSpec row-gather to
    # avoid materializing (N, L, D) in HBM at very large N*L.
    emb = params["embed"][tokens].astype(jnp.bfloat16)        # (N, L, D)
    emb = jnp.pad(emb, ((0, 0), (0, L_pad - L), (0, 0)))

    # Batch tiling.
    if N <= batch_tile:
        TN, N_pad = N, N
    else:
        TN = max(8, (batch_tile // 8) * 8)
        N_pad = pl.cdiv(N, TN) * TN
        if N_pad != N:
            emb = jnp.pad(emb, ((0, N_pad - N), (0, 0), (0, 0)))

    wc, bc, wf, bf, F_pad, C_pad = _pack_params(params, Ks, D, Co, C)
    mask = _build_time_mask(L, Ks, Co, T_u, F_pad)

    out = pl.pallas_call(
        functools.partial(cnn_text_fused_kernel, Kmax=Kmax, T_u=T_u),
        out_shape=jax.ShapeDtypeStruct((N_pad, C_pad), jnp.float32),
        grid_spec=pltpu.PrefetchScalarGridSpec(
            num_scalar_prefetch=0,
            grid=(N_pad // TN,),
            in_specs=[
                pl.BlockSpec((TN, L_pad, D), lambda i: (i, 0, 0)),      # emb tile
                pl.BlockSpec((Kmax * D, F_pad), lambda i: (0, 0)),      # conv W
                pl.BlockSpec((1, F_pad), lambda i: (0, 0)),             # conv b
                pl.BlockSpec((T_u, F_pad), lambda i: (0, 0)),           # time mask
                pl.BlockSpec((F_pad, C_pad), lambda i: (0, 0)),         # fc W
                pl.BlockSpec((1, C_pad), lambda i: (0, 0)),             # fc b
            ],
            out_specs=pl.BlockSpec((TN, C_pad), lambda i: (i, 0)),
        ),
        compiler_params=pltpu.CompilerParams(
            dimension_semantics=("parallel",),       # shard batch across TCs (v7x)
            vmem_limit_bytes=32 * 1024 * 1024,
        ),
    )(emb, wc, bc, mask, wf, bf)

    return out[:N, :C]


if __name__ == "__main__":
    # Small config consistent with the module's __init__.
    V, D, C, Co = 20, 32, 4, 8          # embed_num, embed_dim, class_num, kernel_num
    Ks = (3, 4, 5)                       # kernel_sizes
    N, L = 2, 16                         # batch, sequence length

    key = jax.random.PRNGKey(0)
    k_tok, k_emb, k_fc, *k_convs = jax.random.split(key, 3 + len(Ks))

    tokens = jax.random.randint(k_tok, (N, L), 0, V, dtype=jnp.int32)

    params = {
        "embed": jax.random.normal(k_emb, (V, D), jnp.float32) * 0.1,
        "conv_w": [jax.random.normal(k, (K, D, Co), jnp.float32) * 0.1
                   for k, K in zip(k_convs, Ks)],
        "conv_b": [jnp.full((Co,), 0.01 * (i + 1), jnp.float32)
                   for i in range(len(Ks))],
        "fc_w": jax.random.normal(k_fc, (len(Ks) * Co, C), jnp.float32) * 0.1,
        "fc_b": jnp.zeros((C,), jnp.float32),
    }

    out = cnn_text_forward(tokens, params, Ks)
    out = jax.block_until_ready(out)

    # Pure-JAX reference of the same math (bf16-rounded matmul operands,
    # f32 accumulation / epilogue — matching the kernel's numerics).
    emb_ref = params["embed"][tokens].astype(jnp.bfloat16).astype(jnp.float32)
    ref_pooled = []
    for i, K in enumerate(Ks):
        T = L - K + 1
        w_bf = params["conv_w"][i].astype(jnp.bfloat16).astype(jnp.float32)
        acc = sum(jnp.einsum("ntd,dc->ntc", emb_ref[:, k:k + T, :], w_bf[k])
                  for k in range(K))
        acc = jnp.maximum(acc + params["conv_b"][i], 0.0)
        ref_pooled.append(jnp.max(acc, axis=1))
    ref_logits = jnp.concatenate(ref_pooled, 1) @ params["fc_w"] + params["fc_b"]
    ref = jax.nn.log_softmax(ref_logits, axis=1)

    assert out.shape == (N, C)
    err = float(jnp.max(jnp.abs(out - ref)))
    assert err < 5e-3, f"max abs err {err}"

    print("KERNEL_OK")
</pallas_src>

<mosaic_0001>
module attributes {stable_mosaic.version = 11 : i64} {
  func.func @cnn_text_fused_kernel(%arg0: i32, %arg1: memref<2x18x32xbf16, #tpu.memory_space<vmem>>, %arg2: memref<160x128xbf16, #tpu.memory_space<vmem>>, %arg3: memref<1x128xf32, #tpu.memory_space<vmem>>, %arg4: memref<14x128xf32, #tpu.memory_space<vmem>>, %arg5: memref<128x128xf32, #tpu.memory_space<vmem>>, %arg6: memref<1x128xf32, #tpu.memory_space<vmem>>, %arg7: memref<2x128xf32, #tpu.memory_space<vmem>>) attributes {dimension_semantics = [#tpu.dimension_semantics<parallel>], iteration_bounds = array<i64: 1>, scalar_prefetch = 0 : i64, scratch_operands = 0 : i64, tpu.core_type = #tpu.core_type<tc>, window_params = [{transform_indices = @transform_0, window_bounds = array<i64: 2, 18, 32>}, {pipeline_mode = #tpu.pipeline_mode<synchronous>, transform_indices = @transform_1, window_bounds = array<i64: 160, 128>}, {pipeline_mode = #tpu.pipeline_mode<synchronous>, transform_indices = @transform_2, window_bounds = array<i64: 1, 128>}, {pipeline_mode = #tpu.pipeline_mode<synchronous>, transform_indices = @transform_3, window_bounds = array<i64: 14, 128>}, {pipeline_mode = #tpu.pipeline_mode<synchronous>, transform_indices = @transform_4, window_bounds = array<i64: 128, 128>}, {pipeline_mode = #tpu.pipeline_mode<synchronous>, transform_indices = @transform_5, window_bounds = array<i64: 1, 128>}, {transform_indices = @transform_6, window_bounds = array<i64: 2, 128>}]} {
    %c0 = arith.constant 0 : index
    %c0_0 = arith.constant 0 : index
    %c0_1 = arith.constant 0 : index
    %0 = vector.load %arg1[%c0, %c0_0, %c0_1] : memref<2x18x32xbf16, #tpu.memory_space<vmem>>, vector<2x18x32xbf16>
    %1 = vector.extract_strided_slice %0 {offsets = [0, 0, 0], sizes = [2, 14, 32], strides = [1, 1, 1]} : vector<2x18x32xbf16> to vector<2x14x32xbf16>
    %2 = vector.extract_strided_slice %0 {offsets = [0, 1, 0], sizes = [2, 14, 32], strides = [1, 1, 1]} : vector<2x18x32xbf16> to vector<2x14x32xbf16>
    %3 = vector.extract_strided_slice %0 {offsets = [0, 2, 0], sizes = [2, 14, 32], strides = [1, 1, 1]} : vector<2x18x32xbf16> to vector<2x14x32xbf16>
    %4 = vector.extract_strided_slice %0 {offsets = [0, 3, 0], sizes = [2, 14, 32], strides = [1, 1, 1]} : vector<2x18x32xbf16> to vector<2x14x32xbf16>
    %5 = vector.extract_strided_slice %0 {offsets = [0, 4, 0], sizes = [2, 14, 32], strides = [1, 1, 1]} : vector<2x18x32xbf16> to vector<2x14x32xbf16>
    %6 = tpu.concatenate %1, %2, %3, %4, %5 in 2 : vector<2x14x32xbf16>, vector<2x14x32xbf16>, vector<2x14x32xbf16>, vector<2x14x32xbf16>, vector<2x14x32xbf16> -> vector<2x14x160xbf16>
    %7 = vector.shape_cast %6 : vector<2x14x160xbf16> to vector<28x160xbf16>
    %c0_2 = arith.constant 0 : index
    %c0_3 = arith.constant 0 : index
    %8 = vector.load %arg2[%c0_2, %c0_3] : memref<160x128xbf16, #tpu.memory_space<vmem>>, vector<160x128xbf16>
    %cst = arith.constant dense<0.000000e+00> : vector<28x128xf32>
    %9 = tpu.matmul %7, %8, %cst {dimension_numbers = #tpu.dot_dimension_numbers<[1], [0], [0], [1], [0, 0, 1, 1], [], []>} : vector<28x160xbf16>, vector<160x128xbf16>, vector<28x128xf32> -> vector<28x128xf32>
    %c0_4 = arith.constant 0 : index
    %c0_5 = arith.constant 0 : index
    %10 = vector.load %arg3[%c0_4, %c0_5] : memref<1x128xf32, #tpu.memory_space<vmem>>, vector<1x128xf32>
    %11 = vector.broadcast %10 : vector<1x128xf32> to vector<28x128xf32>
    %12 = arith.addf %9, %11 : vector<28x128xf32>
    %cst_6 = arith.constant 0.000000e+00 : f32
    %13 = vector.broadcast %cst_6 : f32 to vector<28x128xf32>
    %14 = arith.maximumf %12, %13 : vector<28x128xf32>
    %15 = vector.shape_cast %14 : vector<28x128xf32> to vector<2x14x128xf32>
    %c0_7 = arith.constant 0 : index
    %c0_8 = arith.constant 0 : index
    %16 = vector.load %arg4[%c0_7, %c0_8] : memref<14x128xf32, #tpu.memory_space<vmem>>, vector<14x128xf32>
    %17 = vector.shape_cast %16 : vector<14x128xf32> to vector<1x14x128xf32>
    %18 = vector.broadcast %17 : vector<1x14x128xf32> to vector<2x14x128xf32>
    %19 = arith.mulf %15, %18 : vector<2x14x128xf32>
    %cst_9 = arith.constant dense<0xFF800000> : vector<2x128xf32>
    %20 = vector.multi_reduction <maximumf>, %19, %cst_9 [1] : vector<2x14x128xf32> to vector<2x128xf32>
    %c0_10 = arith.constant 0 : index
    %c0_11 = arith.constant 0 : index
    %21 = vector.load %arg5[%c0_10, %c0_11] : memref<128x128xf32, #tpu.memory_space<vmem>>, vector<128x128xf32>
    %cst_12 = arith.constant dense<0.000000e+00> : vector<2x128xf32>
    %22 = tpu.matmul %20, %21, %cst_12 {dimension_numbers = #tpu.dot_dimension_numbers<[1], [0], [0], [1], [0, 0, 1, 1], [], []>} : vector<2x128xf32>, vector<128x128xf32>, vector<2x128xf32> -> vector<2x128xf32>
    %c0_13 = arith.constant 0 : index
    %c0_14 = arith.constant 0 : index
    %23 = vector.load %arg6[%c0_13, %c0_14] : memref<1x128xf32, #tpu.memory_space<vmem>>, vector<1x128xf32>
    %24 = vector.broadcast %23 : vector<1x128xf32> to vector<2x128xf32>
    %25 = arith.addf %22, %24 : vector<2x128xf32>
    %cst_15 = arith.constant dense<0xFF800000> : vector<2xf32>
    %26 = vector.multi_reduction <maximumf>, %25, %cst_15 [1] : vector<2x128xf32> to vector<2xf32>
    %27 = vector.shape_cast %26 : vector<2xf32> to vector<2x1xf32>
    %28 = vector.broadcast %27 : vector<2x1xf32> to vector<2x128xf32>
    %29 = arith.subf %25, %28 : vector<2x128xf32>
    %30 = math.exp %29 : vector<2x128xf32>
    %cst_16 = arith.constant dense<0.000000e+00> : vector<2xf32>
    %31 = vector.multi_reduction <add>, %30, %cst_16 [1] : vector<2x128xf32> to vector<2xf32>
    %32 = vector.shape_cast %31 : vector<2xf32> to vector<2x1xf32>
    %33 = math.log %32 : vector<2x1xf32>
    %34 = vector.broadcast %33 : vector<2x1xf32> to vector<2x128xf32>
    %35 = arith.subf %29, %34 : vector<2x128xf32>
    %c0_17 = arith.constant 0 : index
    %c0_18 = arith.constant 0 : index
    %36 = vector.load %arg7[%c0_17, %c0_18] : memref<2x128xf32, #tpu.memory_space<vmem>>, vector<2x128xf32>
    tpu.vector_store %arg7[%c0_17, %c0_18], %35 {strides = array<i32>} : memref<2x128xf32, #tpu.memory_space<vmem>>, vector<2x128xf32>,
    return
  }
  func.func @transform_0(%arg0: i32) -> (i32, i32, i32) {
    %c0_i32 = arith.constant 0 : i32
    %c0_i32_0 = arith.constant 0 : i32
    %c0_i32_1 = arith.constant 0 : i32
    return %arg0, %c0_i32, %c0_i32_0 : i32, i32, i32
  }
  func.func @transform_1(%arg0: i32) -> (i32, i32) {
    %c0_i32 = arith.constant 0 : i32
    %c0_i32_0 = arith.constant 0 : i32
    %c0_i32_1 = arith.constant 0 : i32
    return %c0_i32, %c0_i32_0 : i32, i32
  }
  func.func @transform_2(%arg0: i32) -> (i32, i32) {
    %c0_i32 = arith.constant 0 : i32
    %c0_i32_0 = arith.constant 0 : i32
    %c0_i32_1 = arith.constant 0 : i32
    return %c0_i32, %c0_i32_0 : i32, i32
  }
  func.func @transform_3(%arg0: i32) -> (i32, i32) {
    %c0_i32 = arith.constant 0 : i32
    %c0_i32_0 = arith.constant 0 : i32
    %c0_i32_1 = arith.constant 0 : i32
    return %c0_i32, %c0_i32_0 : i32, i32
  }
  func.func @transform_4(%arg0: i32) -> (i32, i32) {
    %c0_i32 = arith.constant 0 : i32
    %c0_i32_0 = arith.constant 0 : i32
    %c0_i32_1 = arith.constant 0 : i32
    return %c0_i32, %c0_i32_0 : i32, i32
  }
  func.func @transform_5(%arg0: i32) -> (i32, i32) {
    %c0_i32 = arith.constant 0 : i32
    %c0_i32_0 = arith.constant 0 : i32
    %c0_i32_1 = arith.constant 0 : i32
    return %c0_i32, %c0_i32_0 : i32, i32
  }
  func.func @transform_6(%arg0: i32) -> (i32, i32) {
    %c0_i32 = arith.constant 0 : i32
    %c0_i32_0 = arith.constant 0 : i32
    return %arg0, %c0_i32 : i32, i32
  }
}

</mosaic_0001>

<llo_original>
// kernel: tpu_custom_call.1
$region0: #{tpu_custom_call.1}
  #allocation0 [shape = 'u32[]', space=smem, size = 0x4, offset = 0x4, fixed_abs, tag = 'smem constant byte address 0x4 - core index']
  #allocation1 [shape = 'u32[144,128]{1,0:T(1,128)}', space=vmem, size = 0x12000, scoped, tag = 'internal scratch']
  %s0 = inlined_call_operand.vmem [shape: bf16[2,18,32], index: 0, kind: input, shape index: {}]
  %s1 = inlined_call_operand.hbm [shape: bf16[160,128], index: 1, kind: input, shape index: {}]
  %s2 = inlined_call_operand.vmem [shape: f32[1,128], index: 2, kind: input, shape index: {}]
  %s3 = inlined_call_operand.vmem [shape: f32[14,128], index: 3, kind: input, shape index: {}]
  %s4 = inlined_call_operand.hbm [shape: f32[128,128], index: 4, kind: input, shape index: {}]
  %s5 = inlined_call_operand.vmem [shape: f32[1,128], index: 5, kind: input, shape index: {}]
  %s6 = inlined_call_operand.hbm [shape: f32[2,128], index: 6, kind: output, shape index: {}]
  %s7 = sld [smem:[#allocation0]]
  $region42: #{tpu_custom_call.1} parent=0
    _
  %s9 = ssub.s32 1, %s7
  %s10 = scalar_select 0, %s9, %s7
  $region1: #{tpu_custom_call.1} parent=0
    #allocation2 [shape = 'u8[40960]{0}', space=vmem, size = 0xa000, scoped, tag = 'input window, operand 1, single buffered']
    #allocation3 [shape = 's32[1]{0}', space=sflag, size = 0x4, scoped, tag = 'scoped memory for tpu_custom_call.1']
    #allocation4 [shape = 's32[1]{0}', space=sflag, size = 0x4, scoped, tag = 'scoped memory for tpu_custom_call.1']
    #allocation5 [shape = 'u8[65536]{0}', space=vmem, size = 0x10000, scoped, tag = 'input window, operand 4, single buffered']
    #allocation6 [shape = 's32[1]{0}', space=sflag, size = 0x4, scoped, tag = 'scoped memory for tpu_custom_call.1']
    #allocation7 [shape = 'u8[1024]{0}', space=vmem, size = 0x400, scoped, tag = 'output window, operand 0, single buffered']
    %11 = vsyncpa [#allocation3], 0
    %12 = vsyncpa [#allocation6], 0
    %13 = vsyncpa [#allocation4], 0
    // Predicated region
    $region2: #{tpu_custom_call.1} parent=1 // pred_check
      _
    $region3: #{tpu_custom_call.1} parent=1 // pred_check_branch
      %15 = sbr.rel (0) target = $region5
    $region4: #{tpu_custom_call.1} parent=1 // pred_region
      _
    $region5: #{tpu_custom_call.1} parent=1 // pred_fallthru
      _
    // Predicated region
    $region6: #{tpu_custom_call.1} parent=1 // pred_check
      _
    $region7: #{tpu_custom_call.1} parent=1 // pred_check_branch
      %17 = sbr.rel (0) target = $region9
    $region8: #{tpu_custom_call.1} parent=1 // pred_region
      %s19 = ssub.s32 1280, 1280
      %20 = vsyncadd [#allocation3], %s19
      %s21 = sshll.u32 [#allocation2], 4
      %s22 = int_to_ptr.vmem [resolvable:$true] %s21
      %27 = dma.hbm_to_vmem [thread:$0]  %s1, 1280, %s22, [#allocation3], 64, 64, 4
    $region9: #{tpu_custom_call.1} parent=1 // pred_fallthru
      _
    // Predicated region
    $region10: #{tpu_custom_call.1} parent=1 // pred_check
      _
    $region11: #{tpu_custom_call.1} parent=1 // pred_check_branch
      %29 = sbr.rel (0) target = $region13
    $region12: #{tpu_custom_call.1} parent=1 // pred_region
      _
    $region13: #{tpu_custom_call.1} parent=1 // pred_fallthru
      _
    // Predicated region
    $region14: #{tpu_custom_call.1} parent=1 // pred_check
      _
    $region15: #{tpu_custom_call.1} parent=1 // pred_check_branch
      %31 = sbr.rel (0) target = $region17
    $region16: #{tpu_custom_call.1} parent=1 // pred_region
      _
    $region17: #{tpu_custom_call.1} parent=1 // pred_fallthru
      _
    // Predicated region
    $region18: #{tpu_custom_call.1} parent=1 // pred_check
      _
    $region19: #{tpu_custom_call.1} parent=1 // pred_check_branch
      %33 = sbr.rel (0) target = $region21
    $region20: #{tpu_custom_call.1} parent=1 // pred_region
      %s35 = ssub.s32 2048, 2048
      %36 = vsyncadd [#allocation6], %s35
      %s37 = sshll.u32 [#allocation5], 4
      %s38 = int_to_ptr.vmem [resolvable:$true] %s37
      %43 = dma.hbm_to_vmem [thread:$0]  %s4, 2048, %s38, [#allocation6], 128, 128, 8
    $region21: #{tpu_custom_call.1} parent=1 // pred_fallthru
      _
    // Predicated region
    $region22: #{tpu_custom_call.1} parent=1 // pred_check
      _
    $region23: #{tpu_custom_call.1} parent=1 // pred_check_branch
      %45 = sbr.rel (0) target = $region25
    $region24: #{tpu_custom_call.1} parent=1 // pred_region
      _
    $region25: #{tpu_custom_call.1} parent=1 // pred_fallthru
      _
    // Predicated region
    $region26: #{tpu_custom_call.1} parent=1 // pred_check
      _
    $region27: #{tpu_custom_call.1} parent=1 // pred_check_branch
      %47 = sbr.rel (0) target = $region29
    $region28: #{tpu_custom_call.1} parent=1 // pred_region
      %48 = dma.done [#allocation3], 1280
    $region29: #{tpu_custom_call.1} parent=1 // pred_fallthru
      _
    // Predicated region
    $region30: #{tpu_custom_call.1} parent=1 // pred_check
      _
    $region31: #{tpu_custom_call.1} parent=1 // pred_check_branch
      %50 = sbr.rel (0) target = $region33
    $region32: #{tpu_custom_call.1} parent=1 // pred_region
      %51 = dma.done [#allocation6], 2048
    $region33: #{tpu_custom_call.1} parent=1 // pred_fallthru
      _
    %v53 = vld [vmem:[%s0] sm:$0xf]
    %v54 = vld [vmem:[%s0 + $0x4] sm:$0xf]
    %v55 = vld [vmem:[%s0 + $0x8] sm:$0x1]
    %v56 = vld [vmem:[%s0 + $0xc] sm:$0xf]
    %v57 = vld [vmem:[%s0 + $0x10] sm:$0xf]
    %v58 = vld [vmem:[%s0 + $0x14] sm:$0x1]
    %v63 = vunpack.c.l.b16 %v53
    %v64 = vunpack.c.l.b16 %v54
    %v65 = vunpack.c.l.b16 %v56
    %v66 = vunpack.c.l.b16 %v57
    %v67 = vpack.c.b16 %v64, %v63
    %v68 = vpack.c.b16 %v66, %v65
    %v70 = vshrl.u32 %v67, 16
    %v72 = vshll.u32 %v67, 16
    %v74 = vrot.slane %v72, 1
    %v75 = vor.u32 %v70, %v74
    %v77 = vshrl.u32 %v68, 16
    %v79 = vshll.u32 %v68, 16
    %v81 = vrot.slane %v79, 1
    %v82 = vor.u32 %v77, %v81
    %83 = vrot.lane.b32.xlu0 %v75, 32
    %v84 = vpop.permute.xlu0 %83
    %85 = vrot.lane.b32.xlu0 %v82, 32
    %v86 = vpop.permute.xlu0 %85
    %v87 = vrot.slane %v67, 1
    %v88 = vrot.slane %v68, 1
    %89 = vrot.lane.b32.xlu0 %v87, 64
    %v90 = vpop.permute.xlu0 %89
    %91 = vrot.lane.b32.xlu0 %v88, 64
    %v92 = vpop.permute.xlu0 %91
    %v95 = vunpack.c.l.b16 %v55
    %v96 = vunpack.c.l.b16 %v58
    %v97 = vpack.c.b16 %v95, %v95
    %v98 = vpack.c.b16 %v96, %v96
    %vm99 = vsmask.f32 6400
    %v100 = vrot.slane %v70, 1
    %v101 = vrot.slane %v72, 2
    %v102 = vor.u32 %v100, %v101
    %v104 = vshll.u32 %v97, 16
    %v106 = vrot.slane %v104, 2
    %v107 = vsel %vm99, %v102, %v106
    %v108 = vrot.slane %v77, 1
    %v109 = vrot.slane %v79, 2
    %v110 = vor.u32 %v108, %v109
    %v112 = vshll.u32 %v98, 16
    %v114 = vrot.slane %v112, 2
    %v115 = vsel %vm99, %v110, %v114
    %116 = vrot.lane.b32.xlu0 %v107, 96
    %v117 = vpop.permute.xlu0 %116
    %118 = vrot.lane.b32.xlu0 %v115, 96
    %v119 = vpop.permute.xlu0 %118
    %vm120 = vcmask 1045504
    %v121 = vrot.slane %v67, 2
    %v122 = vrot.slane %v97, 2
    %v123 = vsel %vm120, %v121, %v122
    %v124 = vrot.slane %v68, 2
    %v125 = vrot.slane %v98, 2
    %v126 = vsel %vm120, %v124, %v125
    %vm127 = vcmask 261120
    %v129 = vsel %vm127, %v67, %v84
    %v131 = vsel %vm127, %v68, %v86
    %vm132 = vcmask 523264
    %v134 = vsel %vm132, %v129, %v90
    %v136 = vsel %vm132, %v131, %v92
    %vm137 = vcmask 785408
    %v139 = vsel %vm137, %v134, %v117
    %v141 = vsel %vm137, %v136, %v119
    %v144 = vcombine.low %v139, %v123
    %v145 = vcombine.high %v139, %v123
    %v147 = vunpack.c.l.s4 1966171168
    %v148 = vunpack.c.0.s8 %v147
    %v149 = vlaneseq
    %v150 = vshrl.u32 %v149, 7
    %v151 = vsub.s32 %v148, %v150
    %v152 = vrot.slane %v144, %v151
    %v154 = vunpack.c.l.s4 1966171168
    %v155 = vunpack.c.0.s8 %v154
    %v156 = vlaneseq
    %v157 = vshrl.u32 %v156, 7
    %v158 = vsub.s32 %v155, %v157
    %v159 = vrot.slane %v145, %v158
    %v160 = vcombine.high %v152, %v152
    %v161 = vcombine.high %v159, %v159
    %v163 = vunpack.c.l.s4 1966171168
    %v164 = vunpack.c.0.s8 %v163
    %v165 = vlaneseq
    %v166 = vshrl.u32 %v165, 7
    %v167 = vsub.s32 %v164, %v166
    %v168 = vrot.slane %v152, %v167
    %v170 = vunpack.c.l.s4 1966171168
    %v171 = vunpack.c.0.s8 %v170
    %v172 = vlaneseq
    %v173 = vshrl.u32 %v172, 7
    %v174 = vsub.s32 %v171, %v173
    %v175 = vrot.slane %v159, %v174
    %v177 = vunpack.c.l.s4 1966171168
    %v178 = vunpack.c.0.s8 %v177
    %v179 = vlaneseq
    %v180 = vshrl.u32 %v179, 7
    %v181 = vsub.s32 %v178, %v180
    %v182 = vrot.slane %v160, %v181
    %v184 = vunpack.c.l.s4 1966171168
    %v185 = vunpack.c.0.s8 %v184
    %v186 = vlaneseq
    %v187 = vshrl.u32 %v186, 7
    %v188 = vsub.s32 %v185, %v187
    %v189 = vrot.slane %v161, %v188
    %v190 = vcombine.high %v168, %v168
    %v191 = vcombine.high %v175, %v175
    %v192 = vcombine.high %v182, %v182
    %v193 = vcombine.low %v141, %v126
    %v194 = vcombine.high %v141, %v126
    %v196 = vunpack.c.l.s4 1966171168
    %v197 = vunpack.c.0.s8 %v196
    %v198 = vlaneseq
    %v199 = vshrl.u32 %v198, 7
    %v200 = vsub.s32 %v197, %v199
    %v201 = vrot.slane %v193, %v200
    %v203 = vunpack.c.l.s4 1966171168
    %v204 = vunpack.c.0.s8 %v203
    %v205 = vlaneseq
    %v206 = vshrl.u32 %v205, 7
    %v207 = vsub.s32 %v204, %v206
    %v208 = vrot.slane %v194, %v207
    %v209 = vcombine.high %v201, %v201
    %v210 = vcombine.high %v208, %v208
    %v212 = vunpack.c.l.s4 1966171168
    %v213 = vunpack.c.0.s8 %v212
    %v214 = vlaneseq
    %v215 = vshrl.u32 %v214, 7
    %v216 = vsub.s32 %v213, %v215
    %v217 = vrot.slane %v201, %v216
    %v219 = vunpack.c.l.s4 1966171168
    %v220 = vunpack.c.0.s8 %v219
    %v221 = vlaneseq
    %v222 = vshrl.u32 %v221, 7
    %v223 = vsub.s32 %v220, %v222
    %v224 = vrot.slane %v208, %v223
    %v226 = vunpack.c.l.s4 1966171168
    %v227 = vunpack.c.0.s8 %v226
    %v228 = vlaneseq
    %v229 = vshrl.u32 %v228, 7
    %v230 = vsub.s32 %v227, %v229
    %v231 = vrot.slane %v209, %v230
    %v233 = vunpack.c.l.s4 1966171168
    %v234 = vunpack.c.0.s8 %v233
    %v235 = vlaneseq
    %v236 = vshrl.u32 %v235, 7
    %v237 = vsub.s32 %v234, %v236
    %v238 = vrot.slane %v210, %v237
    %v239 = vcombine.high %v217, %v217
    %v240 = vcombine.high %v224, %v224
    %v241 = vcombine.high %v231, %v231
    %v242 = vld [vmem:[#allocation2] sm:$0xf]
    %v243 = vld [vmem:[#allocation2 + $0x4] sm:$0xf]
    %v244 = vld [vmem:[#allocation2 + $0x8] sm:$0xf]
    %v245 = vld [vmem:[#allocation2 + $0xc] sm:$0xf]
    %v246 = vld [vmem:[#allocation2 + $0x10] sm:$0xf]
    %v247 = vld [vmem:[#allocation2 + $0x14] sm:$0xf]
    %v248 = vld [vmem:[#allocation2 + $0x18] sm:$0xf]
    %v249 = vld [vmem:[#allocation2 + $0x1c] sm:$0xf]
    %v250 = vld [vmem:[#allocation2 + $0x20] sm:$0xf]
    %v251 = vld [vmem:[#allocation2 + $0x24] sm:$0xf]
    %v252 = vld [vmem:[#allocation2 + $0x28] sm:$0xf]
    %v253 = vld [vmem:[#allocation2 + $0x2c] sm:$0xf]
    %v254 = vld [vmem:[#allocation2 + $0x30] sm:$0xf]
    %v255 = vld [vmem:[#allocation2 + $0x34] sm:$0xf]
    %v256 = vld [vmem:[#allocation2 + $0x38] sm:$0xf]
    %v257 = vld [vmem:[#allocation2 + $0x3c] sm:$0xf]
    %v258 = vld [vmem:[#allocation2 + $0x40] sm:$0xf]
    %v259 = vld [vmem:[#allocation2 + $0x44] sm:$0xf]
    %v260 = vld [vmem:[#allocation2 + $0x48] sm:$0xf]
    %v261 = vld [vmem:[#allocation2 + $0x4c] sm:$0xf]
    %v262 = vld [vmem:[%s2] sm:$0x1]
    %v264 = vlaneseq
    %v265 = vshrl.u32 %v264, 7
    %v266 = vsub.s32 0, %v265
    %v267 = vrot.slane %v262, %v266
    %v269 = vcombine.low %v168, %v182
    %v270 = vcombine.low %v190, %v192
    %v271 = vcombine.low %v175, %v189
    %v272 = vcombine.low %v191, %v217
    %v274 = vunpack.c.l.s4 1966171168
    %v275 = vunpack.c.0.s8 %v274
    %v276 = vlaneseq
    %v277 = vshrl.u32 %v276, 7
    %v278 = vsub.s32 %v275, %v277
    %v279 = vrot.slane %v269, %v278
    %v281 = vunpack.c.l.s4 1966171168
    %v282 = vunpack.c.0.s8 %v281
    %v283 = vlaneseq
    %v284 = vshrl.u32 %v283, 7
    %v285 = vsub.s32 %v282, %v284
    %v286 = vrot.slane %v270, %v285
    %v288 = vunpack.c.l.s4 1966171168
    %v289 = vunpack.c.0.s8 %v288
    %v290 = vlaneseq
    %v291 = vshrl.u32 %v290, 7
    %v292 = vsub.s32 %v289, %v291
    %v293 = vrot.slane %v271, %v292
    %v295 = vunpack.c.l.s4 1966171168
    %v296 = vunpack.c.0.s8 %v295
    %v297 = vlaneseq
    %v298 = vshrl.u32 %v297, 7
    %v299 = vsub.s32 %v296, %v298
    %v300 = vrot.slane %v272, %v299
    %v301 = vcombine.low %v279, %v286
    %v302 = vcombine.high %v279, %v286
    %v303 = vcombine.low %v293, %v300
    %v304 = vcombine.high %v293, %v300
    %v306 = vunpack.c.l.s4 1966171168
    %v307 = vunpack.c.0.s8 %v306
    %v308 = vlaneseq
    %v309 = vshrl.u32 %v308, 7
    %v310 = vsub.s32 %v307, %v309
    %v311 = vrot.slane %v301, %v310
    %v313 = vunpack.c.l.s4 1966171168
    %v314 = vunpack.c.0.s8 %v313
    %v315 = vlaneseq
    %v316 = vshrl.u32 %v315, 7
    %v317 = vsub.s32 %v314, %v316
    %v318 = vrot.slane %v302, %v317
    %v320 = vunpack.c.l.s4 1966171168
    %v321 = vunpack.c.0.s8 %v320
    %v322 = vlaneseq
    %v323 = vshrl.u32 %v322, 7
    %v324 = vsub.s32 %v321, %v323
    %v325 = vrot.slane %v303, %v324
    %v327 = vunpack.c.l.s4 1966171168
    %v328 = vunpack.c.0.s8 %v327
    %v329 = vlaneseq
    %v330 = vshrl.u32 %v329, 7
    %v331 = vsub.s32 %v328, %v330
    %v332 = vrot.slane %v304, %v331
    %v333 = vcombine.low %v311, %v325
    %v334 = vcombine.low %v318, %v332
    %v335 = vcombine.low %v231, %v239
    %v336 = vcombine.low %v241, %v224
    %v337 = vcombine.low %v238, %v240
    %v339 = vunpack.c.l.s4 1966171168
    %v340 = vunpack.c.0.s8 %v339
    %v341 = vlaneseq
    %v342 = vshrl.u32 %v341, 7
    %v343 = vsub.s32 %v340, %v342
    %v344 = vrot.slane %v335, %v343
    %v346 = vunpack.c.l.s4 1966171168
    %v347 = vunpack.c.0.s8 %v346
    %v348 = vlaneseq
    %v349 = vshrl.u32 %v348, 7
    %v350 = vsub.s32 %v347, %v349
    %v351 = vrot.slane %v336, %v350
    %v353 = vunpack.c.l.s4 1966171168
    %v354 = vunpack.c.0.s8 %v353
    %v355 = vlaneseq
    %v356 = vshrl.u32 %v355, 7
    %v357 = vsub.s32 %v354, %v356
    %v358 = vrot.slane %v337, %v357
    %v359 = vcombine.low %v344, %v351
    %v360 = vcombine.high %v344, %v351
    %v361 = vcombine.high %v358, %v358
    %v363 = vunpack.c.l.s4 1966171168
    %v364 = vunpack.c.0.s8 %v363
    %v365 = vlaneseq
    %v366 = vshrl.u32 %v365, 7
    %v367 = vsub.s32 %v364, %v366
    %v368 = vrot.slane %v359, %v367
    %v370 = vunpack.c.l.s4 1966171168
    %v371 = vunpack.c.0.s8 %v370
    %v372 = vlaneseq
    %v373 = vshrl.u32 %v372, 7
    %v374 = vsub.s32 %v371, %v373
    %v375 = vrot.slane %v360, %v374
    %v377 = vunpack.c.l.s4 1966171168
    %v378 = vunpack.c.0.s8 %v377
    %v379 = vlaneseq
    %v380 = vshrl.u32 %v379, 7
    %v381 = vsub.s32 %v378, %v380
    %v382 = vrot.slane %v358, %v381
    %v384 = vunpack.c.l.s4 1966171168
    %v385 = vunpack.c.0.s8 %v384
    %v386 = vlaneseq
    %v387 = vshrl.u32 %v386, 7
    %v388 = vsub.s32 %v385, %v387
    %v389 = vrot.slane %v361, %v388
    %v390 = vcombine.low %v368, %v382
    %v391 = vcombine.low %v375, %v389
    %v414 = vunpack.c.l.b16 %v242
    %v415 = vunpack.c.l.b16 %v243
    %v416 = vunpack.c.l.b16 %v244
    %v417 = vunpack.c.l.b16 %v245
    %v418 = vunpack.c.l.b16 %v246
    %v419 = vunpack.c.l.b16 %v247
    %v420 = vunpack.c.l.b16 %v248
    %v421 = vunpack.c.l.b16 %v249
    %v422 = vunpack.c.l.b16 %v250
    %v423 = vunpack.c.l.b16 %v251
    %v424 = vunpack.c.l.b16 %v252
    %v425 = vunpack.c.l.b16 %v253
    %v426 = vunpack.c.l.b16 %v254
    %v427 = vunpack.c.l.b16 %v255
    %v428 = vunpack.c.l.b16 %v256
    %v429 = vunpack.c.l.b16 %v257
    %v430 = vunpack.c.l.b16 %v258
    %v431 = vunpack.c.l.b16 %v259
    %v432 = vunpack.c.l.b16 %v260
    %v433 = vunpack.c.l.b16 %v261
    %v434 = vpack.c.b16 %v415, %v414
    %v435 = vpack.c.b16 %v417, %v416
    %v436 = vpack.c.b16 %v419, %v418
    %v437 = vpack.c.b16 %v421, %v420
    %v438 = vpack.c.b16 %v423, %v422
    %v439 = vpack.c.b16 %v425, %v424
    %v440 = vpack.c.b16 %v427, %v426
    %v441 = vpack.c.b16 %v429, %v428
    %v442 = vpack.c.b16 %v431, %v430
    %v443 = vpack.c.b16 %v433, %v432
    %v455 = vsel %vm127, %v334, 0
    %v458 = vsel %vm127, %v391, 0
    %460 = vmatprep.subr.bf16.mxu0 0
    %461 = vmatpush1.bf16.msra.mxu0 %v434
    %462 = vmatprep.subr.bf16.mxu0 0
    %463 = vmatpush1.bf16.msra.mxu0 %v435
    %464 = vmatprep.subr.bf16.mxu0 0
    %465 = vmatpush1.bf16.msra.mxu0 %v436
    %466 = vmatprep.subr.bf16.mxu0 0
    %467 = vmatpush1.bf16.msra.mxu0 %v437
    %468 = vmatprep.subr.bf16.mxu0 0
    %469 = vmatpush1.bf16.msra.mxu0 %v438
    %470 = vmatprep.subr.bf16.mxu0 0
    %471 = vmatpush1.bf16.msra.mxu0 %v439
    %472 = vmatprep.subr.bf16.mxu0 0
    %473 = vmatpush1.bf16.msra.mxu0 %v440
    %474 = vmatprep.subr.bf16.mxu0 0
    %475 = vmatpush1.bf16.msra.mxu0 %v441
    %476 = vmatprep.subr.bf16.mxu0 0
    %477 = vmatpush1.bf16.msra.mxu0 %v442
    %478 = vmatprep.subr.bf16.mxu0 0
    %479 = vmatpush1.bf16.msra.mxu0 %v443
    %480 = vmatprep.subr.bf16.mxu0 0
    %481 = vmatpush1.bf16.msra.mxu0 0
    %482 = vmatprep.subr.bf16.mxu0 0
    %483 = vmatpush1.bf16.msra.mxu0 0
    %484 = vmatprep.subr.bf16.mxu0 0
    %485 = vmatpush1.bf16.msra.mxu0 0
    %486 = vmatprep.subr.bf16.mxu0 0
    %487 = vmatpush1.bf16.msra.mxu0 0
    %488 = vmatprep.subr.bf16.mxu0 0
    %489 = vmatpush1.bf16.msra.mxu0 0
    %490 = vmatprep.subr.bf16.mxu0 0
    %491 = vmatpush1.bf16.msra.mxu0 0
    %492 = vmatprep.mubr.bf16.mxu0 %v455
    %493 = vmatmul.mubr.bf16.gmra.mrb[0].mxu0 %v333
    %v494 = vpop.f32.mrb[0].mxu0
    %v495 = vadd.f32 %v267, %v494
    %v496 = vpop.f32.mrb[0].mxu0
    %v497 = vpop.f32.mrb[0].mxu0
    %v498 = vadd.f32 %v267, %v497
    %v499 = vpop.f32.mrb[0].mxu0
    %500 = vmatprep.mubr.bf16.mxu0 %v458
    %501 = vmatmul.mubr.bf16.gmra.mrb[0].mxu0 %v390
    %v502 = vpop.f32.mrb[0].mxu0
    %v503 = vadd.f32 %v267, %v502
    %v504 = vpop.f32.mrb[0].mxu0
    %v505 = vpop.f32.mrb[0].mxu0
    %v506 = vadd.f32 %v267, %v505
    %v507 = vpop.f32.mrb[0].mxu0
    %508 = vdwg.mxu0
    %v509 = vmax.f32 %v495, 0.0
    %v510 = vmax.f32 %v498, 0.0
    %v511 = vmax.f32 %v503, 0.0
    %v512 = vmax.f32 %v506, 0.0
    %v517 = vcombine.high %v509, %v509
    %v519 = vunpack.c.l.s4 1983009808
    %v520 = vunpack.c.0.s8 %v519
    %v521 = vlaneseq
    %v522 = vshrl.u32 %v521, 7
    %v523 = vsub.s32 %v520, %v522
    %v524 = vrot.slane %v509, %v523
    %v526 = vunpack.c.l.s4 1983009808
    %v527 = vunpack.c.0.s8 %v526
    %v528 = vlaneseq
    %v529 = vshrl.u32 %v528, 7
    %v530 = vsub.s32 %v527, %v529
    %v531 = vrot.slane %v517, %v530
    %v532 = vcombine.high %v524, %v524
    %v533 = vcombine.high %v531, %v531
    %v534 = vcombine.high %v510, %v510
    %v536 = vunpack.c.l.s4 1983009808
    %v537 = vunpack.c.0.s8 %v536
    %v538 = vlaneseq
    %v539 = vshrl.u32 %v538, 7
    %v540 = vsub.s32 %v537, %v539
    %v541 = vrot.slane %v510, %v540
    %v543 = vunpack.c.l.s4 1983009808
    %v544 = vunpack.c.0.s8 %v543
    %v545 = vlaneseq
    %v546 = vshrl.u32 %v545, 7
    %v547 = vsub.s32 %v544, %v546
    %v548 = vrot.slane %v534, %v547
    %v549 = vcombine.high %v541, %v541
    %v550 = vcombine.high %v548, %v548
    %v551 = vcombine.high %v511, %v511
    %v553 = vunpack.c.l.s4 1983009808
    %v554 = vunpack.c.0.s8 %v553
    %v555 = vlaneseq
    %v556 = vshrl.u32 %v555, 7
    %v557 = vsub.s32 %v554, %v556
    %v558 = vrot.slane %v511, %v557
    %v560 = vunpack.c.l.s4 1983009808
    %v561 = vunpack.c.0.s8 %v560
    %v562 = vlaneseq
    %v563 = vshrl.u32 %v562, 7
    %v564 = vsub.s32 %v561, %v563
    %v565 = vrot.slane %v551, %v564
    %v566 = vcombine.high %v558, %v558
    %v567 = vcombine.high %v565, %v565
    %v569 = vunpack.c.l.s4 1983009808
    %v570 = vunpack.c.0.s8 %v569
    %v571 = vlaneseq
    %v572 = vshrl.u32 %v571, 7
    %v573 = vsub.s32 %v570, %v572
    %v574 = vrot.slane %v512, %v573
    %v575 = vcombine.high %v574, %v574
    %v590 = vld [vmem:[%s3] sm:$0xff]
    %v591 = vld [vmem:[%s3 + $0x8] sm:$0x3f]
    %v594 = vcombine.high %v590, %v590
    %v596 = vunpack.c.l.s4 1983009808
    %v597 = vunpack.c.0.s8 %v596
    %v598 = vlaneseq
    %v599 = vshrl.u32 %v598, 7
    %v600 = vsub.s32 %v597, %v599
    %v601 = vrot.slane %v590, %v600
    %v603 = vunpack.c.l.s4 1983009808
    %v604 = vunpack.c.0.s8 %v603
    %v605 = vlaneseq
    %v606 = vshrl.u32 %v605, 7
    %v607 = vsub.s32 %v604, %v606
    %v608 = vrot.slane %v594, %v607
    %v609 = vcombine.high %v601, %v601
    %v610 = vcombine.high %v608, %v608
    %v611 = vcombine.high %v591, %v591
    %v613 = vunpack.c.l.s4 1983009808
    %v614 = vunpack.c.0.s8 %v613
    %v615 = vlaneseq
    %v616 = vshrl.u32 %v615, 7
    %v617 = vsub.s32 %v614, %v616
    %v618 = vrot.slane %v591, %v617
    %v620 = vunpack.c.l.s4 1983009808
    %v621 = vunpack.c.0.s8 %v620
    %v622 = vlaneseq
    %v623 = vshrl.u32 %v622, 7
    %v624 = vsub.s32 %v621, %v623
    %v625 = vrot.slane %v611, %v624
    %v626 = vcombine.high %v618, %v618
    %v634 = vmul.f32 %v524, %v601
    %v635 = vmul.f32 %v532, %v609
    %v636 = vmul.f32 %v531, %v608
    %v637 = vmul.f32 %v533, %v610
    %v638 = vmul.f32 %v541, %v618
    %v639 = vmul.f32 %v549, %v626
    %v640 = vmul.f32 %v548, %v625
    %v641 = vmul.f32 %v550, %v601
    %v642 = vmul.f32 %v558, %v609
    %v643 = vmul.f32 %v566, %v608
    %v644 = vmul.f32 %v565, %v610
    %v645 = vmul.f32 %v567, %v618
    %v646 = vmul.f32 %v574, %v626
    %v647 = vmul.f32 %v575, %v625
    %v662 = vcombine.low %v634, %v635
    %v663 = vcombine.low %v636, %v637
    %v665 = vunpack.c.l.s4 1983009808
    %v666 = vunpack.c.0.s8 %v665
    %v667 = vlaneseq
    %v668 = vshrl.u32 %v667, 7
    %v669 = vsub.s32 %v666, %v668
    %v670 = vrot.slane %v662, %v669
    %v672 = vunpack.c.l.s4 1983009808
    %v673 = vunpack.c.0.s8 %v672
    %v674 = vlaneseq
    %v675 = vshrl.u32 %v674, 7
    %v676 = vsub.s32 %v673, %v675
    %v677 = vrot.slane %v663, %v676
    %v678 = vcombine.low %v670, %v677
    %v679 = vcombine.low %v638, %v639
    %v681 = vunpack.c.l.s4 1983009808
    %v682 = vunpack.c.0.s8 %v681
    %v683 = vlaneseq
    %v684 = vshrl.u32 %v683, 7
    %v685 = vsub.s32 %v682, %v684
    %v686 = vrot.slane %v679, %v685
    %v688 = vunpack.c.l.s4 1983009808
    %v689 = vunpack.c.0.s8 %v688
    %v690 = vlaneseq
    %v691 = vshrl.u32 %v690, 7
    %v692 = vsub.s32 %v689, %v691
    %v693 = vrot.slane %v640, %v692
    %v694 = vcombine.low %v686, %v693
    %v695 = vcombine.low %v641, %v642
    %v696 = vcombine.low %v643, %v644
    %v698 = vunpack.c.l.s4 1983009808
    %v699 = vunpack.c.0.s8 %v698
    %v700 = vlaneseq
    %v701 = vshrl.u32 %v700, 7
    %v702 = vsub.s32 %v699, %v701
    %v703 = vrot.slane %v695, %v702
    %v705 = vunpack.c.l.s4 1983009808
    %v706 = vunpack.c.0.s8 %v705
    %v707 = vlaneseq
    %v708 = vshrl.u32 %v707, 7
    %v709 = vsub.s32 %v706, %v708
    %v710 = vrot.slane %v696, %v709
    %v711 = vcombine.low %v703, %v710
    %v712 = vcombine.low %v645, %v646
    %v714 = vunpack.c.l.s4 1983009808
    %v715 = vunpack.c.0.s8 %v714
    %v716 = vlaneseq
    %v717 = vshrl.u32 %v716, 7
    %v718 = vsub.s32 %v715, %v717
    %v719 = vrot.slane %v712, %v718
    %v721 = vunpack.c.l.s4 1983009808
    %v722 = vunpack.c.0.s8 %v721
    %v723 = vlaneseq
    %v724 = vshrl.u32 %v723, 7
    %v725 = vsub.s32 %v722, %v724
    %v726 = vrot.slane %v647, %v725
    %v727 = vcombine.low %v719, %v726
    %vm732 = vcmask 1045504
    %v733 = vsel %vm732, %v694, -inf
    %v734 = vmax.f32 %v678, %v733
    %v735 = vrot.slane %v734, 4
    %v736 = vmax.f32 %v734, %v735
    %v737 = vrot.slane %v736, 2
    %v738 = vmax.f32 %v736, %v737
    %v739 = vrot.slane %v738, 1
    %v740 = vmax.f32 %v738, %v739
    %v741 = vsel %vm732, %v727, -inf
    %v742 = vmax.f32 %v711, %v741
    %v743 = vrot.slane %v742, 4
    %v744 = vmax.f32 %v742, %v743
    %v745 = vrot.slane %v744, 2
    %v746 = vmax.f32 %v744, %v745
    %v747 = vrot.slane %v746, 1
    %v748 = vmax.f32 %v746, %v747
    %v749 = vld [vmem:[#allocation5] sm:$0xff]
    %v750 = vld [vmem:[#allocation5 + $0x8] sm:$0xff]
    %v751 = vld [vmem:[#allocation5 + $0x10] sm:$0xff]
    %v752 = vld [vmem:[#allocation5 + $0x18] sm:$0xff]
    %v753 = vld [vmem:[#allocation5 + $0x20] sm:$0xff]
    %v754 = vld [vmem:[#allocation5 + $0x28] sm:$0xff]
    %v755 = vld [vmem:[#allocation5 + $0x30] sm:$0xff]
    %v756 = vld [vmem:[#allocation5 + $0x38] sm:$0xff]
    %v757 = vld [vmem:[#allocation5 + $0x40] sm:$0xff]
    %v758 = vld [vmem:[#allocation5 + $0x48] sm:$0xff]
    %v759 = vld [vmem:[#allocation5 + $0x50] sm:$0xff]
    %v760 = vld [vmem:[#allocation5 + $0x58] sm:$0xff]
    %v761 = vld [vmem:[#allocation5 + $0x60] sm:$0xff]
    %v762 = vld [vmem:[#allocation5 + $0x68] sm:$0xff]
    %v763 = vld [vmem:[#allocation5 + $0x70] sm:$0xff]
    %v764 = vld [vmem:[#allocation5 + $0x78] sm:$0xff]
    %v765 = vld [vmem:[%s5] sm:$0x1]
    %v767 = vlaneseq
    %v768 = vshrl.u32 %v767, 7
    %v769 = vsub.s32 0, %v768
    %v770 = vrot.slane %v765, %v769
    %vm774 = vcmask 1041409
    %v775 = vsel %vm774, %v748, %v740
    %777 = vmatprep.subr.mxu0 0.0
    %778 = vmatpush1.msra.mxu0 %v749
    %779 = vmatprep.subr.mxu0 0.0
    %780 = vmatpush1.msra.mxu0 %v750
    %781 = vmatprep.subr.mxu0 0.0
    %782 = vmatpush1.msra.mxu0 %v751
    %783 = vmatprep.subr.mxu0 0.0
    %784 = vmatpush1.msra.mxu0 %v752
    %785 = vmatprep.subr.mxu0 0.0
    %786 = vmatpush1.msra.mxu0 %v753
    %787 = vmatprep.subr.mxu0 0.0
    %788 = vmatpush1.msra.mxu0 %v754
    %789 = vmatprep.subr.mxu0 0.0
    %790 = vmatpush1.msra.mxu0 %v755
    %791 = vmatprep.subr.mxu0 0.0
    %792 = vmatpush1.msra.mxu0 %v756
    %793 = vmatprep.subr.mxu0 0.0
    %794 = vmatpush1.msra.mxu0 %v757
    %795 = vmatprep.subr.mxu0 0.0
    %796 = vmatpush1.msra.mxu0 %v758
    %797 = vmatprep.subr.mxu0 0.0
    %798 = vmatpush1.msra.mxu0 %v759
    %799 = vmatprep.subr.mxu0 0.0
    %800 = vmatpush1.msra.mxu0 %v760
    %801 = vmatprep.subr.mxu0 0.0
    %802 = vmatpush1.msra.mxu0 %v761
    %803 = vmatprep.subr.mxu0 0.0
    %804 = vmatpush1.msra.mxu0 %v762
    %805 = vmatprep.subr.mxu0 0.0
    %806 = vmatpush1.msra.mxu0 %v763
    %807 = vmatprep.subr.mxu0 0.0
    %808 = vmatpush1.msra.mxu0 %v764
    %809 = vmatprep.subr.mxu0 0.0
    %810 = vmatpush1.msra.mxu0 0.0
    %811 = vmatprep.subr.mxu0 0.0
    %812 = vmatpush1.msra.mxu0 0.0
    %813 = vmatprep.subr.mxu0 0.0
    %814 = vmatpush1.msra.mxu0 0.0
    %815 = vmatprep.subr.mxu0 0.0
    %816 = vmatpush1.msra.mxu0 0.0
    %817 = vmatprep.subr.mxu0 0.0
    %818 = vmatpush1.msra.mxu0 0.0
    %819 = vmatprep.subr.mxu0 0.0
    %820 = vmatpush1.msra.mxu0 0.0
    %821 = vmatprep.subr.mxu0 0.0
    %822 = vmatpush1.msra.mxu0 0.0
    %823 = vmatprep.subr.mxu0 0.0
    %824 = vmatpush1.msra.mxu0 0.0
    %825 = vmatprep.subr.mxu0 0.0
    %826 = vmatpush1.msra.mxu0 0.0
    %827 = vmatprep.subr.mxu0 0.0
    %828 = vmatpush1.msra.mxu0 0.0
    %829 = vmatprep.subr.mxu0 0.0
    %830 = vmatpush1.msra.mxu0 0.0
    %831 = vmatprep.subr.mxu0 0.0
    %832 = vmatpush1.msra.mxu0 0.0
    %833 = vmatprep.subr.mxu0 0.0
    %834 = vmatpush1.msra.mxu0 0.0
    %835 = vmatprep.subr.mxu0 0.0
    %836 = vmatpush1.msra.mxu0 0.0
    %837 = vmatprep.subr.mxu0 0.0
    %838 = vmatpush1.msra.mxu0 0.0
    %839 = vmatprep.subr.mxu0 0.0
    %840 = vmatpush1.msra.mxu0 0.0
    %841 = vmatprep.mubr.f32.mxu0 0.0
    %842 = vmatmul.mubr.f32.gmra.mrb[0].mxu0 %v775
    %v843 = vpop.f32.mrb[0].mxu0
    %v844 = vadd.f32 %v770, %v843
    %v845 = vpop.f32.mrb[0].mxu0
    %846 = vdwg.mxu0
    %vm847 = vcmask 1041408
    %v848 = vsel %vm847, %v844, -inf
    %849 = vmax.xlane.f32.xlu0 %v848
    %v850 = vpop.xlane.xlu0 %849
    %v851 = vsub.f32 %v844, %v850
    %v852 = vmul.f32 %v851, 1.442695
    %v853 = vpow.pop %v852
    %v854 = vsel %vm847, %v853, 0.0
    %855 = vadd.xlane.f32.xlu0 %v854
    %v856 = vpop.xlane.xlu0 %855
    %v857 = vlog2.pop %v856
    %v858 = vmul.f32 %v857, 0.6931472
    %v859 = vsub.f32 %v851, %v858
    %860 = vst [vmem:[#allocation7] sm:$0x3] %v859
    // Predicated region
    $region34: #{tpu_custom_call.1} parent=1 // pred_check
      _
    $region35: #{tpu_custom_call.1} parent=1 // pred_check_branch
      %862 = sbr.rel (0) target = $region37
    $region36: #{tpu_custom_call.1} parent=1 // pred_region
      %s864 = ssub.s32 32, 32
      %865 = vsyncadd [#allocation4], %s864
      %s867 = sshll.u32 [#allocation7], 4
      %s868 = int_to_ptr.vmem [resolvable:$true] %s867
      %870 = dma.vmem_to_hbm [thread:$0]  %s868, 32, %s6, [#allocation4]
    $region37: #{tpu_custom_call.1} parent=1 // pred_fallthru
      _
    // Predicated region
    $region38: #{tpu_custom_call.1} parent=1 // pred_check
      _
    $region39: #{tpu_custom_call.1} parent=1 // pred_check_branch
      %872 = sbr.rel (0) target = $region41
    $region40: #{tpu_custom_call.1} parent=1 // pred_region
      %873 = dma.done [#allocation4], 32
    $region41: #{tpu_custom_call.1} parent=1 // pred_fallthru
      _
    %874 = vsyncpa [#allocation3], 1
    %875 = vsyncpa [#allocation6], 1
    %876 = vsyncpa [#allocation4], 1

</llo_original>
